<compile_context>
chip_gen: v5e
topology: v5e:2x2
jax: 0.10.0
libtpu: 0.0.40
codegen_flags: <defaults>
</compile_context>

<pallas_src>
import jax
import jax.numpy as jnp
from jax.experimental import pallas as pl
from jax.experimental.pallas import tpu as pltpu


def _round_up(x, m):
    return ((x + m - 1) // m) * m


def qnetwork_kernel(x_ref,
                    w1_ref, b1_ref,
                    w2_ref, b2_ref,
                    w3_ref, b3_ref,
                    w4_ref, b4_ref,
                    w5_ref, b5_ref,
                    out_ref):
    """Whole 5-layer MLP hot path for one batch tile."""
    h = x_ref[...]                                          # bf16 (tile, in)

    # Biases are read once per tile; implicit (1,N)+(tile,N) broadcast add on
    # the VPU (no explicit broadcast_in_dim in any loop).
    a = jnp.dot(h, w1_ref[...], preferred_element_type=jnp.float32) + b1_ref[...]
    h = jnp.maximum(a, 0.0).astype(jnp.bfloat16)

    a = jnp.dot(h, w2_ref[...], preferred_element_type=jnp.float32) + b2_ref[...]
    h = jnp.maximum(a, 0.0).astype(jnp.bfloat16)

    a = jnp.dot(h, w3_ref[...], preferred_element_type=jnp.float32) + b3_ref[...]
    h = jnp.maximum(a, 0.0).astype(jnp.bfloat16)

    a = jnp.dot(h, w4_ref[...], preferred_element_type=jnp.float32) + b4_ref[...]
    h = jnp.maximum(a, 0.0).astype(jnp.bfloat16)

    y = jnp.dot(h, w5_ref[...], preferred_element_type=jnp.float32) + b5_ref[...]
    out_ref[...] = y.astype(out_ref.dtype)                  # (tile, 128) bf16


def _pick_batch_tile(B, cap=2048, min_split_rows=512):
    """One tile unless splitting gives >= min_split_rows rows per tile.

    Splitting only pays on v7x (2 TensorCores); on v5e/v6e the grid is a serial
    loop, so extra steps are pure overhead.  When we do split, keep the grid an
    even number of steps so both v7x cores get equal work, and round tiles to
    16 rows (bf16 sublane packing).
    """
    if B < 2 * min_split_rows:
        return _round_up(max(B, 1), 8)          # grid=(1,), full-array block
    n_tiles = max(2, pl.cdiv(B, cap))
    n_tiles = _round_up(n_tiles, 2)             # even grid for 2-TC chips
    return _round_up(pl.cdiv(B, n_tiles), 16)


def qnetwork_forward(x, params, *, batch_tile=None):
    """x: (B, state_size) float32.  params: list of (W_(in,out) f32, b_(1,out) f32)."""
    B, state_size = x.shape
    hidden = params[0][0].shape[1]
    action_size = params[-1][0].shape[1]

    OUT_PAD = 128  # lane-dense padded output width for the last layer

    # ---- batch tiling -------------------------------------------------------
    if batch_tile is None:
        batch_tile = _pick_batch_tile(B)
    batch_tile = max(8, _round_up(batch_tile, 8))
    B_pad = _round_up(B, batch_tile)
    if B_pad != B:
        x = jnp.pad(x, ((0, B_pad - B), (0, 0)))

    # ---- prep operands: bf16 compute inputs, lane-dense padded last layer ---
    x_bf16 = x.astype(jnp.bfloat16)

    flat = []
    for li, (w, b) in enumerate(params):
        if li == len(params) - 1:
            w = jnp.pad(w, ((0, 0), (0, OUT_PAD - action_size)))
            b = jnp.pad(b, ((0, 0), (0, OUT_PAD - action_size)))
        flat.append(w.astype(jnp.bfloat16))
        flat.append(b.astype(jnp.float32))   # bias add stays in f32

    # ---- specs --------------------------------------------------------------
    # Activations: one batch tile per grid step.  Weights/biases: full arrays,
    # constant index_map, single-buffered (they never change across the grid;
    # ~54 KiB total).
    in_specs = [pl.BlockSpec((batch_tile, state_size), lambda i: (i, 0))]
    for arr in flat:
        in_specs.append(
            pl.BlockSpec(arr.shape, lambda i: (0, 0),
                         pipeline_mode=pl.Buffered(1)))

    out_spec = pl.BlockSpec((batch_tile, OUT_PAD), lambda i: (i, 0))

    # ---- cost hint (kernel is memory/overhead-bound) ------------------------
    flops = 2 * B_pad * (state_size * hidden + 3 * hidden * hidden + hidden * OUT_PAD)
    bytes_accessed = (B_pad * state_size * 2          # x (bf16)
                      + B_pad * OUT_PAD * 2           # padded output (bf16)
                      + sum(int(a.size) * a.dtype.itemsize for a in flat))
    cost = pl.CostEstimate(flops=flops, transcendentals=0,
                           bytes_accessed=bytes_accessed)

    out_padded = pl.pallas_call(
        qnetwork_kernel,
        out_shape=jax.ShapeDtypeStruct((B_pad, OUT_PAD), jnp.bfloat16),
        grid_spec=pltpu.PrefetchScalarGridSpec(
            num_scalar_prefetch=0,
            grid=(B_pad // batch_tile,),
            in_specs=in_specs,
            out_specs=out_spec,
        ),
        compiler_params=pltpu.CompilerParams(
            dimension_semantics=("parallel",)),
        cost_estimate=cost,
    )(x_bf16, *flat)

    # Slice away batch / lane padding and upcast for downstream consumers.
    return out_padded[:B, :action_size].astype(jnp.float32)


def init_qnetwork_params(key, state_size, action_size, hidden_size=64):
    """PyTorch-style init; weights stored transposed as (in, out), bias (1, out)."""
    dims = [state_size, hidden_size, hidden_size, hidden_size, hidden_size,
            action_size]
    params = []
    for li in range(5):
        fan_in, fan_out = dims[li], dims[li + 1]
        key, kw, kb = jax.random.split(key, 3)
        bound = 1.0 / (fan_in ** 0.5)
        w = jax.random.uniform(kw, (fan_in, fan_out), jnp.float32,
                               minval=-bound, maxval=bound)
        b = jax.random.uniform(kb, (1, fan_out), jnp.float32,
                               minval=-bound, maxval=bound)
        params.append((w, b))
    return params


def qnetwork_reference(x, params):
    """Pure-JAX f32 reference of the PyTorch forward."""
    h = x
    for i, (w, b) in enumerate(params):
        h = h @ w + b
        if i < len(params) - 1:
            h = jnp.maximum(h, 0.0)
    return h


if __name__ == "__main__":
    state_size = 16
    action_size = 4
    hidden_size = 64
    batch = 8

    key = jax.random.PRNGKey(0)
    key, kx = jax.random.split(key)
    x = jax.random.normal(kx, (batch, state_size), jnp.float32)

    params = init_qnetwork_params(key, state_size, action_size, hidden_size)

    out = qnetwork_forward(x, params)
    out = jax.block_until_ready(out)

    ref = qnetwork_reference(x, params)
    assert out.shape == (batch, action_size), out.shape
    # bf16 MXU inputs / bf16 output with f32 accumulation -> small drift vs f32.
    assert jnp.allclose(out, ref, atol=3e-2, rtol=3e-2), "mismatch vs reference"

    print("KERNEL_OK")
</pallas_src>

<mosaic_0001>
module attributes {stable_mosaic.version = 11 : i64} {
  func.func @qnetwork_kernel(%arg0: i32, %arg1: memref<8x16xbf16, #tpu.memory_space<vmem>>, %arg2: memref<16x64xbf16, #tpu.memory_space<vmem>>, %arg3: memref<1x64xf32, #tpu.memory_space<vmem>>, %arg4: memref<64x64xbf16, #tpu.memory_space<vmem>>, %arg5: memref<1x64xf32, #tpu.memory_space<vmem>>, %arg6: memref<64x64xbf16, #tpu.memory_space<vmem>>, %arg7: memref<1x64xf32, #tpu.memory_space<vmem>>, %arg8: memref<64x64xbf16, #tpu.memory_space<vmem>>, %arg9: memref<1x64xf32, #tpu.memory_space<vmem>>, %arg10: memref<64x128xbf16, #tpu.memory_space<vmem>>, %arg11: memref<1x128xf32, #tpu.memory_space<vmem>>, %arg12: memref<8x128xbf16, #tpu.memory_space<vmem>>) attributes {dimension_semantics = [#tpu.dimension_semantics<parallel>], iteration_bounds = array<i64: 1>, scalar_prefetch = 0 : i64, scratch_operands = 0 : i64, tpu.core_type = #tpu.core_type<tc>, window_params = [{transform_indices = @transform_0, window_bounds = array<i64: 8, 16>}, {pipeline_mode = #tpu.pipeline_mode<synchronous>, transform_indices = @transform_1, window_bounds = array<i64: 16, 64>}, {pipeline_mode = #tpu.pipeline_mode<synchronous>, transform_indices = @transform_2, window_bounds = array<i64: 1, 64>}, {pipeline_mode = #tpu.pipeline_mode<synchronous>, transform_indices = @transform_3, window_bounds = array<i64: 64, 64>}, {pipeline_mode = #tpu.pipeline_mode<synchronous>, transform_indices = @transform_4, window_bounds = array<i64: 1, 64>}, {pipeline_mode = #tpu.pipeline_mode<synchronous>, transform_indices = @transform_5, window_bounds = array<i64: 64, 64>}, {pipeline_mode = #tpu.pipeline_mode<synchronous>, transform_indices = @transform_6, window_bounds = array<i64: 1, 64>}, {pipeline_mode = #tpu.pipeline_mode<synchronous>, transform_indices = @transform_7, window_bounds = array<i64: 64, 64>}, {pipeline_mode = #tpu.pipeline_mode<synchronous>, transform_indices = @transform_8, window_bounds = array<i64: 1, 64>}, {pipeline_mode = #tpu.pipeline_mode<synchronous>, transform_indices = @transform_9, window_bounds = array<i64: 64, 128>}, {pipeline_mode = #tpu.pipeline_mode<synchronous>, transform_indices = @transform_10, window_bounds = array<i64: 1, 128>}, {transform_indices = @transform_11, window_bounds = array<i64: 8, 128>}]} {
    %c0 = arith.constant 0 : index
    %c0_0 = arith.constant 0 : index
    %0 = vector.load %arg1[%c0, %c0_0] : memref<8x16xbf16, #tpu.memory_space<vmem>>, vector<8x16xbf16>
    %c0_1 = arith.constant 0 : index
    %c0_2 = arith.constant 0 : index
    %1 = vector.load %arg2[%c0_1, %c0_2] : memref<16x64xbf16, #tpu.memory_space<vmem>>, vector<16x64xbf16>
    %cst = arith.constant dense<0.000000e+00> : vector<8x64xf32>
    %2 = tpu.matmul %0, %1, %cst {dimension_numbers = #tpu.dot_dimension_numbers<[1], [0], [0], [1], [0, 0, 1, 1], [], []>} : vector<8x16xbf16>, vector<16x64xbf16>, vector<8x64xf32> -> vector<8x64xf32>
    %c0_3 = arith.constant 0 : index
    %c0_4 = arith.constant 0 : index
    %3 = vector.load %arg3[%c0_3, %c0_4] : memref<1x64xf32, #tpu.memory_space<vmem>>, vector<1x64xf32>
    %4 = vector.broadcast %3 : vector<1x64xf32> to vector<8x64xf32>
    %5 = arith.addf %2, %4 : vector<8x64xf32>
    %cst_5 = arith.constant 0.000000e+00 : f32
    %6 = vector.broadcast %cst_5 : f32 to vector<8x64xf32>
    %7 = arith.maximumf %5, %6 : vector<8x64xf32>
    %8 = arith.truncf %7 : vector<8x64xf32> to vector<8x64xbf16>
    %c0_6 = arith.constant 0 : index
    %c0_7 = arith.constant 0 : index
    %9 = vector.load %arg4[%c0_6, %c0_7] : memref<64x64xbf16, #tpu.memory_space<vmem>>, vector<64x64xbf16>
    %cst_8 = arith.constant dense<0.000000e+00> : vector<8x64xf32>
    %10 = tpu.matmul %8, %9, %cst_8 {dimension_numbers = #tpu.dot_dimension_numbers<[1], [0], [0], [1], [0, 0, 1, 1], [], []>} : vector<8x64xbf16>, vector<64x64xbf16>, vector<8x64xf32> -> vector<8x64xf32>
    %c0_9 = arith.constant 0 : index
    %c0_10 = arith.constant 0 : index
    %11 = vector.load %arg5[%c0_9, %c0_10] : memref<1x64xf32, #tpu.memory_space<vmem>>, vector<1x64xf32>
    %12 = vector.broadcast %11 : vector<1x64xf32> to vector<8x64xf32>
    %13 = arith.addf %10, %12 : vector<8x64xf32>
    %cst_11 = arith.constant 0.000000e+00 : f32
    %14 = vector.broadcast %cst_11 : f32 to vector<8x64xf32>
    %15 = arith.maximumf %13, %14 : vector<8x64xf32>
    %16 = arith.truncf %15 : vector<8x64xf32> to vector<8x64xbf16>
    %c0_12 = arith.constant 0 : index
    %c0_13 = arith.constant 0 : index
    %17 = vector.load %arg6[%c0_12, %c0_13] : memref<64x64xbf16, #tpu.memory_space<vmem>>, vector<64x64xbf16>
    %cst_14 = arith.constant dense<0.000000e+00> : vector<8x64xf32>
    %18 = tpu.matmul %16, %17, %cst_14 {dimension_numbers = #tpu.dot_dimension_numbers<[1], [0], [0], [1], [0, 0, 1, 1], [], []>} : vector<8x64xbf16>, vector<64x64xbf16>, vector<8x64xf32> -> vector<8x64xf32>
    %c0_15 = arith.constant 0 : index
    %c0_16 = arith.constant 0 : index
    %19 = vector.load %arg7[%c0_15, %c0_16] : memref<1x64xf32, #tpu.memory_space<vmem>>, vector<1x64xf32>
    %20 = vector.broadcast %19 : vector<1x64xf32> to vector<8x64xf32>
    %21 = arith.addf %18, %20 : vector<8x64xf32>
    %cst_17 = arith.constant 0.000000e+00 : f32
    %22 = vector.broadcast %cst_17 : f32 to vector<8x64xf32>
    %23 = arith.maximumf %21, %22 : vector<8x64xf32>
    %24 = arith.truncf %23 : vector<8x64xf32> to vector<8x64xbf16>
    %c0_18 = arith.constant 0 : index
    %c0_19 = arith.constant 0 : index
    %25 = vector.load %arg8[%c0_18, %c0_19] : memref<64x64xbf16, #tpu.memory_space<vmem>>, vector<64x64xbf16>
    %cst_20 = arith.constant dense<0.000000e+00> : vector<8x64xf32>
    %26 = tpu.matmul %24, %25, %cst_20 {dimension_numbers = #tpu.dot_dimension_numbers<[1], [0], [0], [1], [0, 0, 1, 1], [], []>} : vector<8x64xbf16>, vector<64x64xbf16>, vector<8x64xf32> -> vector<8x64xf32>
    %c0_21 = arith.constant 0 : index
    %c0_22 = arith.constant 0 : index
    %27 = vector.load %arg9[%c0_21, %c0_22] : memref<1x64xf32, #tpu.memory_space<vmem>>, vector<1x64xf32>
    %28 = vector.broadcast %27 : vector<1x64xf32> to vector<8x64xf32>
    %29 = arith.addf %26, %28 : vector<8x64xf32>
    %cst_23 = arith.constant 0.000000e+00 : f32
    %30 = vector.broadcast %cst_23 : f32 to vector<8x64xf32>
    %31 = arith.maximumf %29, %30 : vector<8x64xf32>
    %32 = arith.truncf %31 : vector<8x64xf32> to vector<8x64xbf16>
    %c0_24 = arith.constant 0 : index
    %c0_25 = arith.constant 0 : index
    %33 = vector.load %arg10[%c0_24, %c0_25] : memref<64x128xbf16, #tpu.memory_space<vmem>>, vector<64x128xbf16>
    %cst_26 = arith.constant dense<0.000000e+00> : vector<8x128xf32>
    %34 = tpu.matmul %32, %33, %cst_26 {dimension_numbers = #tpu.dot_dimension_numbers<[1], [0], [0], [1], [0, 0, 1, 1], [], []>} : vector<8x64xbf16>, vector<64x128xbf16>, vector<8x128xf32> -> vector<8x128xf32>
    %c0_27 = arith.constant 0 : index
    %c0_28 = arith.constant 0 : index
    %35 = vector.load %arg11[%c0_27, %c0_28] : memref<1x128xf32, #tpu.memory_space<vmem>>, vector<1x128xf32>
    %36 = vector.broadcast %35 : vector<1x128xf32> to vector<8x128xf32>
    %37 = arith.addf %34, %36 : vector<8x128xf32>
    %38 = arith.truncf %37 : vector<8x128xf32> to vector<8x128xbf16>
    %c0_29 = arith.constant 0 : index
    %c0_30 = arith.constant 0 : index
    %39 = vector.load %arg12[%c0_29, %c0_30] : memref<8x128xbf16, #tpu.memory_space<vmem>>, vector<8x128xbf16>
    tpu.vector_store %arg12[%c0_29, %c0_30], %38 {strides = array<i32>} : memref<8x128xbf16, #tpu.memory_space<vmem>>, vector<8x128xbf16>,
    return
  }
  func.func @transform_0(%arg0: i32) -> (i32, i32) {
    %c0_i32 = arith.constant 0 : i32
    %c0_i32_0 = arith.constant 0 : i32
    return %arg0, %c0_i32 : i32, i32
  }
  func.func @transform_1(%arg0: i32) -> (i32, i32) {
    %c0_i32 = arith.constant 0 : i32
    %c0_i32_0 = arith.constant 0 : i32
    %c0_i32_1 = arith.constant 0 : i32
    return %c0_i32, %c0_i32_0 : i32, i32
  }
  func.func @transform_2(%arg0: i32) -> (i32, i32) {
    %c0_i32 = arith.constant 0 : i32
    %c0_i32_0 = arith.constant 0 : i32
    %c0_i32_1 = arith.constant 0 : i32
    return %c0_i32, %c0_i32_0 : i32, i32
  }
  func.func @transform_3(%arg0: i32) -> (i32, i32) {
    %c0_i32 = arith.constant 0 : i32
    %c0_i32_0 = arith.constant 0 : i32
    %c0_i32_1 = arith.constant 0 : i32
    return %c0_i32, %c0_i32_0 : i32, i32
  }
  func.func @transform_4(%arg0: i32) -> (i32, i32) {
    %c0_i32 = arith.constant 0 : i32
    %c0_i32_0 = arith.constant 0 : i32
    %c0_i32_1 = arith.constant 0 : i32
    return %c0_i32, %c0_i32_0 : i32, i32
  }
  func.func @transform_5(%arg0: i32) -> (i32, i32) {
    %c0_i32 = arith.constant 0 : i32
    %c0_i32_0 = arith.constant 0 : i32
    %c0_i32_1 = arith.constant 0 : i32
    return %c0_i32, %c0_i32_0 : i32, i32
  }
  func.func @transform_6(%arg0: i32) -> (i32, i32) {
    %c0_i32 = arith.constant 0 : i32
    %c0_i32_0 = arith.constant 0 : i32
    %c0_i32_1 = arith.constant 0 : i32
    return %c0_i32, %c0_i32_0 : i32, i32
  }
  func.func @transform_7(%arg0: i32) -> (i32, i32) {
    %c0_i32 = arith.constant 0 : i32
    %c0_i32_0 = arith.constant 0 : i32
    %c0_i32_1 = arith.constant 0 : i32
    return %c0_i32, %c0_i32_0 : i32, i32
  }
  func.func @transform_8(%arg0: i32) -> (i32, i32) {
    %c0_i32 = arith.constant 0 : i32
    %c0_i32_0 = arith.constant 0 : i32
    %c0_i32_1 = arith.constant 0 : i32
    return %c0_i32, %c0_i32_0 : i32, i32
  }
  func.func @transform_9(%arg0: i32) -> (i32, i32) {
    %c0_i32 = arith.constant 0 : i32
    %c0_i32_0 = arith.constant 0 : i32
    %c0_i32_1 = arith.constant 0 : i32
    return %c0_i32, %c0_i32_0 : i32, i32
  }
  func.func @transform_10(%arg0: i32) -> (i32, i32) {
    %c0_i32 = arith.constant 0 : i32
    %c0_i32_0 = arith.constant 0 : i32
    %c0_i32_1 = arith.constant 0 : i32
    return %c0_i32, %c0_i32_0 : i32, i32
  }
  func.func @transform_11(%arg0: i32) -> (i32, i32) {
    %c0_i32 = arith.constant 0 : i32
    %c0_i32_0 = arith.constant 0 : i32
    return %arg0, %c0_i32 : i32, i32
  }
}

</mosaic_0001>

<llo_original>
// kernel: tpu_custom_call.1
$region0: #{tpu_custom_call.1}
  #allocation0 [shape = 'u32[]', space=smem, size = 0x4, offset = 0x4, fixed_abs, tag = 'smem constant byte address 0x4 - core index']
  #allocation1 [shape = 'u32[72,128]{1,0:T(1,128)}', space=vmem, size = 0x9000, scoped, tag = 'internal scratch']
  %s0 = inlined_call_operand.hbm [shape: bf16[8,16], index: 0, kind: input, shape index: {}]
  %s1 = inlined_call_operand.hbm [shape: bf16[16,64], index: 1, kind: input, shape index: {}]
  %s2 = inlined_call_operand.vmem [shape: f32[1,64], index: 2, kind: input, shape index: {}]
  %s3 = inlined_call_operand.hbm [shape: bf16[64,64], index: 3, kind: input, shape index: {}]
  %s4 = inlined_call_operand.vmem [shape: f32[1,64], index: 4, kind: input, shape index: {}]
  %s5 = inlined_call_operand.hbm [shape: bf16[64,64], index: 5, kind: input, shape index: {}]
  %s6 = inlined_call_operand.vmem [shape: f32[1,64], index: 6, kind: input, shape index: {}]
  %s7 = inlined_call_operand.hbm [shape: bf16[64,64], index: 7, kind: input, shape index: {}]
  %s8 = inlined_call_operand.vmem [shape: f32[1,64], index: 8, kind: input, shape index: {}]
  %s9 = inlined_call_operand.hbm [shape: bf16[64,128], index: 9, kind: input, shape index: {}]
  %s10 = inlined_call_operand.vmem [shape: f32[1,128], index: 10, kind: input, shape index: {}]
  %s11 = inlined_call_operand.hbm [shape: bf16[8,128], index: 11, kind: output, shape index: {}]
  %s12 = sld [smem:[#allocation0]]
  $region78: #{tpu_custom_call.1} parent=0
    _
  %s14 = ssub.s32 1, %s12
  %s15 = scalar_select 0, %s14, %s12
  $region1: #{tpu_custom_call.1} parent=0
    #allocation2 [shape = 'u8[2048]{0}', space=vmem, size = 0x800, scoped, tag = 'input window, operand 0, single buffered']
    #allocation3 [shape = 's32[1]{0}', space=sflag, size = 0x4, scoped, tag = 'scoped memory for tpu_custom_call.1']
    #allocation4 [shape = 's32[1]{0}', space=sflag, size = 0x4, scoped, tag = 'scoped memory for tpu_custom_call.1']
    #allocation5 [shape = 'u8[4096]{0}', space=vmem, size = 0x1000, scoped, tag = 'input window, operand 1, single buffered']
    #allocation6 [shape = 's32[1]{0}', space=sflag, size = 0x4, scoped, tag = 'scoped memory for tpu_custom_call.1']
    #allocation7 [shape = 'u8[16384]{0}', space=vmem, size = 0x4000, scoped, tag = 'input window, operand 3, single buffered']
    #allocation8 [shape = 'u8[16384]{0}', space=vmem, size = 0x4000, scoped, tag = 'input window, operand 5, single buffered']
    #allocation9 [shape = 's32[1]{0}', space=sflag, size = 0x4, scoped, tag = 'scoped memory for tpu_custom_call.1']
    #allocation10 [shape = 'u8[16384]{0}', space=vmem, size = 0x4000, scoped, tag = 'input window, operand 7, single buffered']
    #allocation11 [shape = 'u8[16384]{0}', space=vmem, size = 0x4000, scoped, tag = 'input window, operand 9, single buffered']
    #allocation12 [shape = 's32[1]{0}', space=sflag, size = 0x4, scoped, tag = 'scoped memory for tpu_custom_call.1']
    #allocation13 [shape = 'u8[2048]{0}', space=vmem, size = 0x800, scoped, tag = 'output window, operand 0, single buffered']
    %16 = vsyncpa [#allocation3], 0
    %17 = vsyncpa [#allocation6], 0
    %18 = vsyncpa [#allocation9], 0
    %19 = vsyncpa [#allocation12], 0
    %20 = vsyncpa [#allocation4], 0
    // Predicated region
    $region2: #{tpu_custom_call.1} parent=1 // pred_check
      _
    $region3: #{tpu_custom_call.1} parent=1 // pred_check_branch
      %22 = sbr.rel (0) target = $region5
    $region4: #{tpu_custom_call.1} parent=1 // pred_region
      %24 = vsyncadd [#allocation3], 0
      %s26 = sshll.u32 %s0, 4
      %s27 = int_to_ptr.hbm [resolvable:$true] %s26
      %s28 = sshll.u32 [#allocation2], 4
      %s29 = int_to_ptr.vmem [resolvable:$true] %s28
      %31 = dma.hbm_to_vmem [thread:$0]  %s27, 64, %s29, [#allocation3]
    $region5: #{tpu_custom_call.1} parent=1 // pred_fallthru
      _
    // Predicated region
    $region6: #{tpu_custom_call.1} parent=1 // pred_check
      _
    $region7: #{tpu_custom_call.1} parent=1 // pred_check_branch
      %33 = sbr.rel (0) target = $region9
    $region8: #{tpu_custom_call.1} parent=1 // pred_region
      %35 = vsyncadd [#allocation6], 0
      %s36 = sshll.u32 %s1, 4
      %s37 = int_to_ptr.hbm [resolvable:$true] %s36
      %s38 = sshll.u32 [#allocation5], 4
      %s39 = int_to_ptr.vmem [resolvable:$true] %s38
      %44 = dma.hbm_to_vmem [thread:$0]  %s37, 128, %s39, [#allocation6], 64, 64, 4
    $region9: #{tpu_custom_call.1} parent=1 // pred_fallthru
      _
    // Predicated region
    $region10: #{tpu_custom_call.1} parent=1 // pred_check
      _
    $region11: #{tpu_custom_call.1} parent=1 // pred_check_branch
      %46 = sbr.rel (0) target = $region13
    $region12: #{tpu_custom_call.1} parent=1 // pred_region
      _
    $region13: #{tpu_custom_call.1} parent=1 // pred_fallthru
      _
    // Predicated region
    $region14: #{tpu_custom_call.1} parent=1 // pred_check
      _
    $region15: #{tpu_custom_call.1} parent=1 // pred_check_branch
      %48 = sbr.rel (0) target = $region17
    $region16: #{tpu_custom_call.1} parent=1 // pred_region
      %50 = vsyncadd [#allocation6], 0
      %s51 = sshll.u32 %s3, 4
      %s52 = int_to_ptr.hbm [resolvable:$true] %s51
      %s53 = sshll.u32 [#allocation7], 4
      %s54 = int_to_ptr.vmem [resolvable:$true] %s53
      %59 = dma.hbm_to_vmem [thread:$0]  %s52, 512, %s54, [#allocation6], 64, 64, 4
    $region17: #{tpu_custom_call.1} parent=1 // pred_fallthru
      _
    // Predicated region
    $region18: #{tpu_custom_call.1} parent=1 // pred_check
      _
    $region19: #{tpu_custom_call.1} parent=1 // pred_check_branch
      %61 = sbr.rel (0) target = $region21
    $region20: #{tpu_custom_call.1} parent=1 // pred_region
      _
    $region21: #{tpu_custom_call.1} parent=1 // pred_fallthru
      _
    // Predicated region
    $region22: #{tpu_custom_call.1} parent=1 // pred_check
      _
    $region23: #{tpu_custom_call.1} parent=1 // pred_check_branch
      %63 = sbr.rel (0) target = $region25
    $region24: #{tpu_custom_call.1} parent=1 // pred_region
      %65 = vsyncadd [#allocation9], 0
      %s66 = sshll.u32 %s5, 4
      %s67 = int_to_ptr.hbm [resolvable:$true] %s66
      %s68 = sshll.u32 [#allocation8], 4
      %s69 = int_to_ptr.vmem [resolvable:$true] %s68
      %74 = dma.hbm_to_vmem [thread:$0]  %s67, 512, %s69, [#allocation9], 64, 64, 4
    $region25: #{tpu_custom_call.1} parent=1 // pred_fallthru
      _
    // Predicated region
    $region26: #{tpu_custom_call.1} parent=1 // pred_check
      _
    $region27: #{tpu_custom_call.1} parent=1 // pred_check_branch
      %76 = sbr.rel (0) target = $region29
    $region28: #{tpu_custom_call.1} parent=1 // pred_region
      _
    $region29: #{tpu_custom_call.1} parent=1 // pred_fallthru
      _
    // Predicated region
    $region30: #{tpu_custom_call.1} parent=1 // pred_check
      _
    $region31: #{tpu_custom_call.1} parent=1 // pred_check_branch
      %78 = sbr.rel (0) target = $region33
    $region32: #{tpu_custom_call.1} parent=1 // pred_region
      %80 = vsyncadd [#allocation9], 0
      %s81 = sshll.u32 %s7, 4
      %s82 = int_to_ptr.hbm [resolvable:$true] %s81
      %s83 = sshll.u32 [#allocation10], 4
      %s84 = int_to_ptr.vmem [resolvable:$true] %s83
      %89 = dma.hbm_to_vmem [thread:$0]  %s82, 512, %s84, [#allocation9], 64, 64, 4
    $region33: #{tpu_custom_call.1} parent=1 // pred_fallthru
      _
    // Predicated region
    $region34: #{tpu_custom_call.1} parent=1 // pred_check
      _
    $region35: #{tpu_custom_call.1} parent=1 // pred_check_branch
      %91 = sbr.rel (0) target = $region37
    $region36: #{tpu_custom_call.1} parent=1 // pred_region
      _
    $region37: #{tpu_custom_call.1} parent=1 // pred_fallthru
      _
    // Predicated region
    $region38: #{tpu_custom_call.1} parent=1 // pred_check
      _
    $region39: #{tpu_custom_call.1} parent=1 // pred_check_branch
      %93 = sbr.rel (0) target = $region41
    $region40: #{tpu_custom_call.1} parent=1 // pred_region
      %95 = vsyncadd [#allocation12], 0
      %s96 = sshll.u32 %s9, 4
      %s97 = int_to_ptr.hbm [resolvable:$true] %s96
      %s98 = sshll.u32 [#allocation11], 4
      %s99 = int_to_ptr.vmem [resolvable:$true] %s98
      %104 = dma.hbm_to_vmem [thread:$0]  %s97, 512, %s99, [#allocation12], 64, 64, 4
    $region41: #{tpu_custom_call.1} parent=1 // pred_fallthru
      _
    // Predicated region
    $region42: #{tpu_custom_call.1} parent=1 // pred_check
      _
    $region43: #{tpu_custom_call.1} parent=1 // pred_check_branch
      %106 = sbr.rel (0) target = $region45
    $region44: #{tpu_custom_call.1} parent=1 // pred_region
      _
    $region45: #{tpu_custom_call.1} parent=1 // pred_fallthru
      _
    // Predicated region
    $region46: #{tpu_custom_call.1} parent=1 // pred_check
      _
    $region47: #{tpu_custom_call.1} parent=1 // pred_check_branch
      %108 = sbr.rel (0) target = $region49
    $region48: #{tpu_custom_call.1} parent=1 // pred_region
      %110 = dma.done [#allocation3], 64
    $region49: #{tpu_custom_call.1} parent=1 // pred_fallthru
      _
    // Predicated region
    $region50: #{tpu_custom_call.1} parent=1 // pred_check
      _
    $region51: #{tpu_custom_call.1} parent=1 // pred_check_branch
      %112 = sbr.rel (0) target = $region53
    $region52: #{tpu_custom_call.1} parent=1 // pred_region
      %114 = dma.done [#allocation6], 128
    $region53: #{tpu_custom_call.1} parent=1 // pred_fallthru
      _
    // Predicated region
    $region54: #{tpu_custom_call.1} parent=1 // pred_check
      _
    $region55: #{tpu_custom_call.1} parent=1 // pred_check_branch
      %116 = sbr.rel (0) target = $region57
    $region56: #{tpu_custom_call.1} parent=1 // pred_region
      %118 = dma.done [#allocation6], 512
    $region57: #{tpu_custom_call.1} parent=1 // pred_fallthru
      _
    // Predicated region
    $region58: #{tpu_custom_call.1} parent=1 // pred_check
      _
    $region59: #{tpu_custom_call.1} parent=1 // pred_check_branch
      %120 = sbr.rel (0) target = $region61
    $region60: #{tpu_custom_call.1} parent=1 // pred_region
      %122 = dma.done [#allocation9], 512
    $region61: #{tpu_custom_call.1} parent=1 // pred_fallthru
      _
    // Predicated region
    $region62: #{tpu_custom_call.1} parent=1 // pred_check
      _
    $region63: #{tpu_custom_call.1} parent=1 // pred_check_branch
      %124 = sbr.rel (0) target = $region65
    $region64: #{tpu_custom_call.1} parent=1 // pred_region
      %126 = dma.done [#allocation9], 512
    $region65: #{tpu_custom_call.1} parent=1 // pred_fallthru
      _
    // Predicated region
    $region66: #{tpu_custom_call.1} parent=1 // pred_check
      _
    $region67: #{tpu_custom_call.1} parent=1 // pred_check_branch
      %128 = sbr.rel (0) target = $region69
    $region68: #{tpu_custom_call.1} parent=1 // pred_region
      %130 = dma.done [#allocation12], 512
    $region69: #{tpu_custom_call.1} parent=1 // pred_fallthru
      _
    %v132 = vld [vmem:[#allocation2] sm:$0xf]
    %v133 = vld [vmem:[#allocation5] sm:$0xf]
    %v134 = vld [vmem:[#allocation5 + $0x4] sm:$0xf]
    %v135 = vld [vmem:[%s2] sm:$0x1]
    %v137 = vperm.slane %v135, 0
    %v141 = vunpack.c.l.b16 %v133
    %v142 = vunpack.c.l.b16 %v134
    %v143 = vpack.c.b16 %v142, %v141
    %vm145 = vcmask 130048
    %v147 = vsel %vm145, %v132, 0
    %149 = vmatpush.bf16.msra.mxu0 0
    %150 = vmatpush.bf16.msra.mxu0 0
    %151 = vmatpush.bf16.msra.mxu0 0
    %152 = vmatpush.bf16.msra.mxu0 0
    %153 = vmatpush.bf16.msra.mxu0 0
    %154 = vmatpush.bf16.msra.mxu0 0
    %155 = vmatpush.bf16.msra.mxu0 0
    %156 = vmatpush.bf16.msra.mxu0 %v143
    %157 = vmatmul.bf16.gmra.mxu0 %v147
    %v158 = vpop.f32.mrf.mxu0
    %v159 = vadd.f32 %v137, %v158
    %v160 = vpop.f32.mrf.mxu0
    %161 = vdwg.mxu0
    %v162 = vmax.f32 %v159, 0.0
    %v163 = vpack.c.bf16 %v162, %v162
    %v164 = vld [vmem:[#allocation7] sm:$0xf]
    %v165 = vld [vmem:[#allocation7 + $0x4] sm:$0xf]
    %v166 = vld [vmem:[#allocation7 + $0x8] sm:$0xf]
    %v167 = vld [vmem:[#allocation7 + $0xc] sm:$0xf]
    %v168 = vld [vmem:[#allocation7 + $0x10] sm:$0xf]
    %v169 = vld [vmem:[#allocation7 + $0x14] sm:$0xf]
    %v170 = vld [vmem:[#allocation7 + $0x18] sm:$0xf]
    %v171 = vld [vmem:[#allocation7 + $0x1c] sm:$0xf]
    %v172 = vld [vmem:[%s4] sm:$0x1]
    %v174 = vperm.slane %v172, 0
    %v184 = vunpack.c.l.b16 %v164
    %v185 = vunpack.c.l.b16 %v165
    %v186 = vunpack.c.l.b16 %v166
    %v187 = vunpack.c.l.b16 %v167
    %v188 = vunpack.c.l.b16 %v168
    %v189 = vunpack.c.l.b16 %v169
    %v190 = vunpack.c.l.b16 %v170
    %v191 = vunpack.c.l.b16 %v171
    %v192 = vpack.c.b16 %v185, %v184
    %v193 = vpack.c.b16 %v187, %v186
    %v194 = vpack.c.b16 %v189, %v188
    %v195 = vpack.c.b16 %v191, %v190
    %vm200 = vcmask 523264
    %v202 = vsel %vm200, %v163, 0
    %204 = vmatpush.bf16.msra.mxu0 0
    %205 = vmatpush.bf16.msra.mxu0 0
    %206 = vmatpush.bf16.msra.mxu0 0
    %207 = vmatpush.bf16.msra.mxu0 0
    %208 = vmatpush.bf16.msra.mxu0 %v195
    %209 = vmatpush.bf16.msra.mxu0 %v194
    %210 = vmatpush.bf16.msra.mxu0 %v193
    %211 = vmatpush.bf16.msra.mxu0 %v192
    %212 = vmatmul.bf16.gmra.mxu0 %v202
    %v213 = vpop.f32.mrf.mxu0
    %v214 = vadd.f32 %v174, %v213
    %v215 = vpop.f32.mrf.mxu0
    %216 = vdwg.mxu0
    %v217 = vmax.f32 %v214, 0.0
    %v218 = vpack.c.bf16 %v217, %v217
    %v219 = vld [vmem:[#allocation8] sm:$0xf]
    %v220 = vld [vmem:[#allocation8 + $0x4] sm:$0xf]
    %v221 = vld [vmem:[#allocation8 + $0x8] sm:$0xf]
    %v222 = vld [vmem:[#allocation8 + $0xc] sm:$0xf]
    %v223 = vld [vmem:[#allocation8 + $0x10] sm:$0xf]
    %v224 = vld [vmem:[#allocation8 + $0x14] sm:$0xf]
    %v225 = vld [vmem:[#allocation8 + $0x18] sm:$0xf]
    %v226 = vld [vmem:[#allocation8 + $0x1c] sm:$0xf]
    %v227 = vld [vmem:[%s6] sm:$0x1]
    %v229 = vperm.slane %v227, 0
    %v239 = vunpack.c.l.b16 %v219
    %v240 = vunpack.c.l.b16 %v220
    %v241 = vunpack.c.l.b16 %v221
    %v242 = vunpack.c.l.b16 %v222
    %v243 = vunpack.c.l.b16 %v223
    %v244 = vunpack.c.l.b16 %v224
    %v245 = vunpack.c.l.b16 %v225
    %v246 = vunpack.c.l.b16 %v226
    %v247 = vpack.c.b16 %v240, %v239
    %v248 = vpack.c.b16 %v242, %v241
    %v249 = vpack.c.b16 %v244, %v243
    %v250 = vpack.c.b16 %v246, %v245
    %v256 = vsel %vm200, %v218, 0
    %258 = vmatpush.bf16.msra.mxu0 0
    %259 = vmatpush.bf16.msra.mxu0 0
    %260 = vmatpush.bf16.msra.mxu0 0
    %261 = vmatpush.bf16.msra.mxu0 0
    %262 = vmatpush.bf16.msra.mxu0 %v250
    %263 = vmatpush.bf16.msra.mxu0 %v249
    %264 = vmatpush.bf16.msra.mxu0 %v248
    %265 = vmatpush.bf16.msra.mxu0 %v247
    %266 = vmatmul.bf16.gmra.mxu0 %v256
    %v267 = vpop.f32.mrf.mxu0
    %v268 = vadd.f32 %v229, %v267
    %v269 = vpop.f32.mrf.mxu0
    %270 = vdwg.mxu0
    %v271 = vmax.f32 %v268, 0.0
    %v272 = vpack.c.bf16 %v271, %v271
    %v273 = vld [vmem:[#allocation10] sm:$0xf]
    %v274 = vld [vmem:[#allocation10 + $0x4] sm:$0xf]
    %v275 = vld [vmem:[#allocation10 + $0x8] sm:$0xf]
    %v276 = vld [vmem:[#allocation10 + $0xc] sm:$0xf]
    %v277 = vld [vmem:[#allocation10 + $0x10] sm:$0xf]
    %v278 = vld [vmem:[#allocation10 + $0x14] sm:$0xf]
    %v279 = vld [vmem:[#allocation10 + $0x18] sm:$0xf]
    %v280 = vld [vmem:[#allocation10 + $0x1c] sm:$0xf]
    %v281 = vld [vmem:[%s8] sm:$0x1]
    %v283 = vperm.slane %v281, 0
    %v293 = vunpack.c.l.b16 %v273
    %v294 = vunpack.c.l.b16 %v274
    %v295 = vunpack.c.l.b16 %v275
    %v296 = vunpack.c.l.b16 %v276
    %v297 = vunpack.c.l.b16 %v277
    %v298 = vunpack.c.l.b16 %v278
    %v299 = vunpack.c.l.b16 %v279
    %v300 = vunpack.c.l.b16 %v280
    %v301 = vpack.c.b16 %v294, %v293
    %v302 = vpack.c.b16 %v296, %v295
    %v303 = vpack.c.b16 %v298, %v297
    %v304 = vpack.c.b16 %v300, %v299
    %v310 = vsel %vm200, %v272, 0
    %312 = vmatpush.bf16.msra.mxu0 0
    %313 = vmatpush.bf16.msra.mxu0 0
    %314 = vmatpush.bf16.msra.mxu0 0
    %315 = vmatpush.bf16.msra.mxu0 0
    %316 = vmatpush.bf16.msra.mxu0 %v304
    %317 = vmatpush.bf16.msra.mxu0 %v303
    %318 = vmatpush.bf16.msra.mxu0 %v302
    %319 = vmatpush.bf16.msra.mxu0 %v301
    %320 = vmatmul.bf16.gmra.mxu0 %v310
    %v321 = vpop.f32.mrf.mxu0
    %v322 = vadd.f32 %v283, %v321
    %v323 = vpop.f32.mrf.mxu0
    %324 = vdwg.mxu0
    %v325 = vmax.f32 %v322, 0.0
    %v326 = vpack.c.bf16 %v325, %v325
    %v327 = vld [vmem:[#allocation11] sm:$0xf]
    %v328 = vld [vmem:[#allocation11 + $0x4] sm:$0xf]
    %v329 = vld [vmem:[#allocation11 + $0x8] sm:$0xf]
    %v330 = vld [vmem:[#allocation11 + $0xc] sm:$0xf]
    %v331 = vld [vmem:[#allocation11 + $0x10] sm:$0xf]
    %v332 = vld [vmem:[#allocation11 + $0x14] sm:$0xf]
    %v333 = vld [vmem:[#allocation11 + $0x18] sm:$0xf]
    %v334 = vld [vmem:[#allocation11 + $0x1c] sm:$0xf]
    %v335 = vld [vmem:[%s10] sm:$0x1]
    %v337 = vperm.slane %v335, 0
    %v347 = vunpack.c.l.b16 %v327
    %v348 = vunpack.c.l.b16 %v328
    %v349 = vunpack.c.l.b16 %v329
    %v350 = vunpack.c.l.b16 %v330
    %v351 = vunpack.c.l.b16 %v331
    %v352 = vunpack.c.l.b16 %v332
    %v353 = vunpack.c.l.b16 %v333
    %v354 = vunpack.c.l.b16 %v334
    %v355 = vpack.c.b16 %v348, %v347
    %v356 = vpack.c.b16 %v350, %v349
    %v357 = vpack.c.b16 %v352, %v351
    %v358 = vpack.c.b16 %v354, %v353
    %v364 = vsel %vm200, %v326, 0
    %366 = vmatpush.bf16.msra.mxu0 0
    %367 = vmatpush.bf16.msra.mxu0 0
    %368 = vmatpush.bf16.msra.mxu0 0
    %369 = vmatpush.bf16.msra.mxu0 0
    %370 = vmatpush.bf16.msra.mxu0 %v358
    %371 = vmatpush.bf16.msra.mxu0 %v357
    %372 = vmatpush.bf16.msra.mxu0 %v356
    %373 = vmatpush.bf16.msra.mxu0 %v355
    %374 = vmatmul.bf16.gmra.mxu0 %v364
    %v375 = vpop.f32.mrf.mxu0
    %v376 = vadd.f32 %v337, %v375
    %v377 = vpop.f32.mrf.mxu0
    %378 = vdwg.mxu0
    %v379 = vpack.c.bf16 %v376, %v376
    %380 = vst [vmem:[#allocation13] sm:$0xf] %v379
    // Predicated region
    $region70: #{tpu_custom_call.1} parent=1 // pred_check
      _
    $region71: #{tpu_custom_call.1} parent=1 // pred_check_branch
      %382 = sbr.rel (0) target = $region73
    $region72: #{tpu_custom_call.1} parent=1 // pred_region
      %384 = vsyncadd [#allocation4], 0
      %s386 = sshll.u32 [#allocation13], 4
      %s387 = int_to_ptr.vmem [resolvable:$true] %s386
      %s388 = sshll.u32 %s11, 4
      %s389 = int_to_ptr.hbm [resolvable:$true] %s388
      %391 = dma.vmem_to_hbm [thread:$0]  %s387, 64, %s389, [#allocation4]
    $region73: #{tpu_custom_call.1} parent=1 // pred_fallthru
      _
    // Predicated region
    $region74: #{tpu_custom_call.1} parent=1 // pred_check
      _
    $region75: #{tpu_custom_call.1} parent=1 // pred_check_branch
      %393 = sbr.rel (0) target = $region77
    $region76: #{tpu_custom_call.1} parent=1 // pred_region
      %395 = dma.done [#allocation4], 64
    $region77: #{tpu_custom_call.1} parent=1 // pred_fallthru
      _
    %396 = vsyncpa [#allocation3], 1
    %397 = vsyncpa [#allocation6], 1
    %398 = vsyncpa [#allocation9], 1
    %399 = vsyncpa [#allocation12], 1
    %400 = vsyncpa [#allocation4], 1

</llo_original>
